<compile_context>
chip_gen: v5e
topology: v5e:2x2
jax: 0.10.0
libtpu: 0.0.40
codegen_flags: <defaults>
</compile_context>

<pallas_src>
import functools

import jax
import jax.numpy as jnp
from jax import lax
from jax.experimental import pallas as pl
from jax.experimental.pallas import tpu as pltpu


# ----------------------------- planning helpers -------------------------------

def _round_up(x, m):
    return ((x + m - 1) // m) * m


def _vmem_capacity_bytes():
    """Physical VMEM per TensorCore; conservative (v7x-sized) fallback."""
    try:
        cap = int(getattr(pltpu.get_tpu_info(), "vmem_capacity_bytes", 0))
        if cap > 0:
            return cap
    except Exception:
        pass
    return 64 * 1024 * 1024


def _largest_divisor_tile(s, cap_lanes):
    """Largest multiple-of-128 divisor of s (requires s % 128 == 0), <= cap."""
    best = 128
    t = 128
    while t <= min(s, cap_lanes):
        if s % t == 0:
            best = t
        t += 128
    return best


def _lane_cap(budget_bytes, per_lane_bytes, s):
    """Largest multiple-of-128 lane count whose per-step bytes fit the budget."""
    cap = budget_bytes // max(per_lane_bytes, 1)
    cap = max(128, (cap // 128) * 128)
    return min(cap, _round_up(s, 128))


def _padded_plan(S, cap1, cap2):
    """Tile plan that pads S up to a multiple of the (larger) pass-1 tile."""
    s_tile2 = cap2
    s_tile1 = max(1, cap1 // cap2) * cap2
    s_grid = _round_up(S, s_tile1)
    return s_tile2, s_tile1, s_grid


# --------------------------- fused single-pass kernel -------------------------

def _fused_kernel(x_ref, w1_ref, b1_ref, w2_ref, b2_ref, cw_ref, cb_ref,
                  o_ref, acc_sc, *, inv_spatial, chunk):
    n_chunks = x_ref.shape[1] // chunk

    # ---- squeeze: per-channel spatial sum, chunked so f32 temporaries stay
    #      O(C * chunk) no matter how large the resident slab is.
    acc_sc[...] = jnp.zeros_like(acc_sc)

    @pl.loop(0, n_chunks)
    def _(j):
        off = pl.multiple_of(j * chunk, chunk)
        xc = x_ref[:, pl.ds(off, chunk)].astype(jnp.float32)        # (C, chunk)
        acc_sc[...] += jnp.sum(xc, axis=1, keepdims=True)

    # ---- tiny cSE MLP, once per batch element
    mean = acc_sc[...] * inv_spatial                                 # (C, 1)
    h = jnp.dot(w1_ref[...], mean, preferred_element_type=jnp.float32)
    h = jnp.maximum(h + b1_ref[...], 0.0)                            # (Cr, 1)
    z = jnp.dot(w2_ref[...], h, preferred_element_type=jnp.float32)
    c_scale = jax.nn.sigmoid(z + b2_ref[...])                        # (C, 1)

    cw = cw_ref[...]                                                 # (C, 1)
    cb = cb_ref[0]

    # ---- excite: out = max(x * cSE_gate, x * sSE_gate), lane-dense stores
    @pl.loop(0, n_chunks)
    def _(j):
        off = pl.multiple_of(j * chunk, chunk)
        xc = x_ref[:, pl.ds(off, chunk)].astype(jnp.float32)         # (C, chunk)
        s_scale = jax.nn.sigmoid(jnp.sum(xc * cw, axis=0, keepdims=True) + cb)
        o_ref[:, pl.ds(off, chunk)] = jnp.maximum(
            xc * c_scale, xc * s_scale).astype(o_ref.dtype)


def _run_fused(x2, w1, b1, w2, b2, cw, cb, *, S, S_pad, vmem_limit):
    B, C, _ = x2.shape
    Cr = w1.shape[0]
    dtype = x2.dtype
    itemsize = jnp.dtype(dtype).itemsize

    if S_pad != S:
        x2 = jnp.pad(x2, ((0, 0), (0, 0), (0, S_pad - S)))

    # In-kernel chunk granularity: keep (C, chunk) f32 temporaries ~<= 2 MiB.
    chunk_cap = max(128, ((512 * 1024) // max(C, 1)) // 128 * 128)
    chunk = _largest_divisor_tile(S_pad, min(2048, chunk_cap))

    kernel = functools.partial(_fused_kernel,
                               inv_spatial=1.0 / float(S), chunk=chunk)
    return pl.pallas_call(
        kernel,
        out_shape=jax.ShapeDtypeStruct((B, C, S_pad), dtype),
        grid_spec=pltpu.PrefetchScalarGridSpec(
            num_scalar_prefetch=0,
            grid=(B,),
            in_specs=[
                pl.BlockSpec((None, C, S_pad), lambda b: (b, 0, 0)),   # x slab
                pl.BlockSpec((Cr, C), lambda b: (0, 0)),               # fc1_w
                pl.BlockSpec((Cr, 1), lambda b: (0, 0)),               # fc1_b
                pl.BlockSpec((C, Cr), lambda b: (0, 0)),               # fc2_w
                pl.BlockSpec((C, 1), lambda b: (0, 0)),                # fc2_b
                pl.BlockSpec((C, 1), lambda b: (0, 0)),                # conv_w
                pl.BlockSpec(memory_space=pltpu.MemorySpace.SMEM),     # conv_b
            ],
            out_specs=pl.BlockSpec((None, C, S_pad), lambda b: (b, 0, 0)),
            scratch_shapes=[pltpu.VMEM((C, 1), jnp.float32)],
        ),
        compiler_params=pltpu.CompilerParams(
            dimension_semantics=("parallel",),
            vmem_limit_bytes=vmem_limit),
        cost_estimate=pl.CostEstimate(
            flops=int(6 * B * C * S_pad),
            transcendentals=int(B * (S_pad + 2 * C)),
            bytes_accessed=int(2 * B * C * S_pad * itemsize)),
    )(x2, w1, b1, w2, b2, cw, cb)


# ----------------------------- two-pass fallback -------------------------------

def _reduce_kernel(x_ref, sum_ref, acc_sc):
    s_idx = pl.program_id(2)

    @pl.when(s_idx == 0)
    def _():
        acc_sc[...] = jnp.zeros_like(acc_sc)

    # running per-channel sum over this core's spatial tiles
    acc_sc[...] += jnp.sum(x_ref[...].astype(jnp.float32), axis=1, keepdims=True)

    @pl.when(s_idx == pl.num_programs(2) - 1)
    def _():
        sum_ref[...] = acc_sc[...]


def _apply_kernel(x_ref, cscale_ref, cw_ref, cb_ref, o_ref):
    x = x_ref[...].astype(jnp.float32)                  # (C, s_tile)
    c_scale = cscale_ref[...]                           # (C, 1) per-channel gate
    # sSE 1x1x1 conv as VPU multiply + sublane reduce (keeps the MXU idle)
    s = jnp.sum(x * cw_ref[...], axis=0, keepdims=True) + cb_ref[0]
    s_scale = jax.nn.sigmoid(s)                         # (1, s_tile) per-voxel gate
    o_ref[...] = jnp.maximum(x * c_scale, x * s_scale).astype(o_ref.dtype)


def _run_two_pass(x2, w1, b1, w2, b2, cw, cb, *, S, tile_budget_bytes,
                  vmem_limit):
    B, C, _ = x2.shape
    dtype = x2.dtype
    itemsize = jnp.dtype(dtype).itemsize

    # Per-step VMEM per lane of tile:
    #   pass 2: 2 double-buffered input + 2 output tiles (x dtype) + ~4 f32 temps
    #   pass 1: 2 double-buffered input tiles (x dtype)            + ~2 f32 temps
    cap2 = _lane_cap(tile_budget_bytes, C * (4 * itemsize + 4 * 4), S)
    cap1 = _lane_cap(tile_budget_bytes, C * (2 * itemsize + 2 * 4), S)

    if S % 128 == 0:
        d2 = _largest_divisor_tile(S, cap2)
        if d2 >= cap2 or C * d2 * itemsize >= (2 << 20):
            s_tile2, s_tile1, s_grid = d2, _largest_divisor_tile(S, cap1), S
        else:
            s_tile2, s_tile1, s_grid = _padded_plan(S, cap1, cap2)
    else:
        s_tile2, s_tile1, s_grid = _padded_plan(S, cap1, cap2)

    if s_grid != S:
        x2 = jnp.pad(x2, ((0, 0), (0, 0), (0, s_grid - S)))

    n_s1 = s_grid // s_tile1
    n_s2 = s_grid // s_tile2
    # Split the reduction over a 'parallel' axis so both TensorCores share it
    # on v7x even when B == 1 (no effect on single-TC parts).
    n_split = 2 if n_s1 % 2 == 0 else 1
    n_inner = n_s1 // n_split

    # -------- pass 1: per-channel partial sums (MLP hoisted out) --------
    partial = pl.pallas_call(
        _reduce_kernel,
        out_shape=jax.ShapeDtypeStruct((B * n_split, C, 1), jnp.float32),
        grid_spec=pltpu.PrefetchScalarGridSpec(
            num_scalar_prefetch=0,
            grid=(B, n_split, n_inner),
            in_specs=[pl.BlockSpec((None, C, s_tile1),
                                   lambda b, p, s: (b, 0, p * n_inner + s))],
            out_specs=pl.BlockSpec((None, C, 1),
                                   lambda b, p, s: (b * n_split + p, 0, 0)),
            scratch_shapes=[pltpu.VMEM((C, 1), jnp.float32)],
        ),
        compiler_params=pltpu.CompilerParams(
            dimension_semantics=("parallel", "parallel", "arbitrary"),
            vmem_limit_bytes=vmem_limit),
        cost_estimate=pl.CostEstimate(
            flops=int(B * C * s_grid),
            transcendentals=0,
            bytes_accessed=int(B * C * s_grid * itemsize)),
    )(x2)

    # -------- cSE gate: tiny MLP on (B, C) means, in plain JAX --------
    sums = jnp.sum(partial.reshape(B, n_split, C), axis=1)        # (B, C)
    mean = sums / float(S)
    hp = lax.Precision.HIGHEST
    h = jnp.maximum(jnp.dot(mean, w1.T, precision=hp) + b1[:, 0], 0.0)
    gate = jax.nn.sigmoid(jnp.dot(h, w2.T, precision=hp) + b2[:, 0])
    c_scale = gate[:, :, None].astype(jnp.float32)                # (B, C, 1)

    # -------- pass 2: apply cSE / sSE gates, streamed over large S tiles -----
    out = pl.pallas_call(
        _apply_kernel,
        out_shape=jax.ShapeDtypeStruct((B, C, s_grid), dtype),
        grid_spec=pltpu.PrefetchScalarGridSpec(
            num_scalar_prefetch=0,
            grid=(B, n_s2),
            in_specs=[
                pl.BlockSpec((None, C, s_tile2), lambda b, s: (b, 0, s)),  # x
                pl.BlockSpec((None, C, 1), lambda b, s: (b, 0, 0)),        # gate
                pl.BlockSpec((C, 1), lambda b, s: (0, 0)),                 # conv_w
                pl.BlockSpec(memory_space=pltpu.MemorySpace.SMEM),         # conv_b
            ],
            out_specs=pl.BlockSpec((None, C, s_tile2), lambda b, s: (b, 0, s)),
        ),
        compiler_params=pltpu.CompilerParams(
            dimension_semantics=("parallel", "parallel"),
            vmem_limit_bytes=vmem_limit),
        cost_estimate=pl.CostEstimate(
            flops=int(5 * B * C * s_grid),
            transcendentals=int(B * s_grid),
            bytes_accessed=int(2 * B * C * s_grid * itemsize)),
    )(x2, c_scale, cw, cb)
    return out


# --------------------------------- wrapper ------------------------------------

def channel_spatial_se_3d(x, fc1_w, fc1_b, fc2_w, fc2_b, conv_w, conv_b, *,
                          tile_budget_bytes=None, max_fused_slab_bytes=None):
    """x: (B, C, D, H, W) float32 or bfloat16. Returns tensor of same shape/dtype."""
    B, C, D, H, W = x.shape
    S = D * H * W
    Cr = fc1_w.shape[0]
    itemsize = jnp.dtype(x.dtype).itemsize

    vmem_cap = _vmem_capacity_bytes()
    vmem_limit = int(vmem_cap * 3 // 4)              # explicit scoped-VMEM limit
    if tile_budget_bytes is None:
        tile_budget_bytes = int(vmem_cap * 0.45)     # blocks + f32 temps per step
    if max_fused_slab_bytes is None:
        max_fused_slab_bytes = tile_budget_bytes // 4   # 2 in + 2 out slabs

    # parameter layouts chosen so no transposes are needed inside the kernels
    w1 = fc1_w.astype(jnp.float32)                   # (Cr, C)
    w2 = fc2_w.astype(jnp.float32)                   # (C, Cr)
    b1 = fc1_b.reshape(Cr, 1).astype(jnp.float32)
    b2 = fc2_b.reshape(C, 1).astype(jnp.float32)
    cw = conv_w.reshape(C, 1).astype(jnp.float32)    # sSE weight, bcast over lanes
    cb = conv_b.reshape(1).astype(jnp.float32)       # scalar -> SMEM

    x2 = x.reshape(B, C, S)
    s128 = _round_up(S, 128)
    slab_bytes = C * s128 * itemsize

    # TODO(synk): for C < 8 a (C, S//128, 128)-style repack would fill sublanes
    # densely; skipped because both paths are HBM-bound where it is neutral.
    if slab_bytes <= max_fused_slab_bytes:
        out = _run_fused(x2, w1, b1, w2, b2, cw, cb,
                         S=S, S_pad=s128, vmem_limit=vmem_limit)
    else:
        out = _run_two_pass(x2, w1, b1, w2, b2, cw, cb, S=S,
                            tile_budget_bytes=tile_budget_bytes,
                            vmem_limit=vmem_limit)
    return out[:, :, :S].reshape(B, C, D, H, W)


# ------------------------------- reference ------------------------------------

def _reference(x, fc1_w, fc1_b, fc2_w, fc2_b, conv_w, conv_b):
    # pure-JAX reference matching the PyTorch forward
    mean = x.mean(axis=(2, 3, 4))                                   # (B, C)
    h = jnp.maximum(mean @ fc1_w.T + fc1_b, 0.0)                    # (B, Cr)
    c_scale = jax.nn.sigmoid(h @ fc2_w.T + fc2_b)                   # (B, C)
    cse = x * c_scale[:, :, None, None, None]
    s = jnp.einsum('bcdhw,c->bdhw', x, conv_w) + conv_b             # (B, D, H, W)
    sse = x * jax.nn.sigmoid(s)[:, None]
    return jnp.maximum(cse, sse)


if __name__ == "__main__":
    B, C, D, H, W = 2, 4, 8, 8, 8
    reduction_ratio = 2
    Cr = C // reduction_ratio

    key = jax.random.PRNGKey(0)
    k = jax.random.split(key, 7)
    x      = jax.random.normal(k[0], (B, C, D, H, W), dtype=jnp.float32)
    fc1_w  = jax.random.normal(k[1], (Cr, C), dtype=jnp.float32) * 0.5
    fc1_b  = jax.random.normal(k[2], (Cr,),   dtype=jnp.float32) * 0.1
    fc2_w  = jax.random.normal(k[3], (C, Cr), dtype=jnp.float32) * 0.5
    fc2_b  = jax.random.normal(k[4], (C,),    dtype=jnp.float32) * 0.1
    conv_w = jax.random.normal(k[5], (C,),    dtype=jnp.float32) * 0.5
    conv_b = jax.random.normal(k[6], (),      dtype=jnp.float32) * 0.1

    ref = _reference(x, fc1_w, fc1_b, fc2_w, fc2_b, conv_w, conv_b)

    # 1) default path: the per-batch (C, S) slab is tiny -> fused single-pass.
    out = channel_spatial_se_3d(x, fc1_w, fc1_b, fc2_w, fc2_b, conv_w, conv_b)
    out = jax.block_until_ready(out)
    assert out.shape == (B, C, D, H, W)
    assert jnp.allclose(out, ref, atol=1e-5, rtol=1e-5)

    # 2) force the tiled two-pass path with tiny budgets so the accumulator /
    #    finalize logic and the split reduction are exercised (S=512 -> 4 tiles).
    out2 = channel_spatial_se_3d(x, fc1_w, fc1_b, fc2_w, fc2_b, conv_w, conv_b,
                                 max_fused_slab_bytes=0, tile_budget_bytes=8192)
    out2 = jax.block_until_ready(out2)
    assert jnp.allclose(out2, ref, atol=1e-5, rtol=1e-5)

    # 3) bf16 activations + non-128-multiple spatial size (exercises the
    #    zero-padding path and bf16 streaming with f32 in-kernel compute).
    xb = jax.random.normal(k[0], (B, C, 5, 6, 7), dtype=jnp.float32)
    xb16 = xb.astype(jnp.bfloat16)
    refb = _reference(xb16.astype(jnp.float32), fc1_w, fc1_b, fc2_w, fc2_b,
                      conv_w, conv_b)
    outb = channel_spatial_se_3d(xb16, fc1_w, fc1_b, fc2_w, fc2_b,
                                 conv_w, conv_b)
    outb = jax.block_until_ready(outb)
    assert outb.dtype == jnp.bfloat16
    assert outb.shape == (B, C, 5, 6, 7)
    assert jnp.allclose(outb.astype(jnp.float32), refb, atol=2e-2, rtol=2e-2)

    print("KERNEL_OK")
</pallas_src>

<mosaic_0001>
module attributes {stable_mosaic.version = 11 : i64} {
  func.func @_fused_kernel(%arg0: i32, %arg1: memref<1x4x512xf32, #tpu.memory_space<vmem>>, %arg2: memref<2x4xf32, #tpu.memory_space<vmem>>, %arg3: memref<2x1xf32, #tpu.memory_space<vmem>>, %arg4: memref<4x2xf32, #tpu.memory_space<vmem>>, %arg5: memref<4x1xf32, #tpu.memory_space<vmem>>, %arg6: memref<4x1xf32, #tpu.memory_space<vmem>>, %arg7: memref<1xf32, #tpu.memory_space<smem>>, %arg8: memref<1x4x512xf32, #tpu.memory_space<vmem>>, %arg9: memref<4x1xf32, #tpu.memory_space<vmem>>) attributes {dimension_semantics = [#tpu.dimension_semantics<parallel>], iteration_bounds = array<i64: 2>, scalar_prefetch = 0 : i64, scratch_operands = 1 : i64, tpu.core_type = #tpu.core_type<tc>, window_params = [{transform_indices = @transform_0, window_bounds = array<i64: 1, 4, 512>}, {pipeline_mode = #tpu.pipeline_mode<synchronous>, transform_indices = @transform_1, window_bounds = array<i64: 2, 4>}, {pipeline_mode = #tpu.pipeline_mode<synchronous>, transform_indices = @transform_2, window_bounds = array<i64: 2, 1>}, {pipeline_mode = #tpu.pipeline_mode<synchronous>, transform_indices = @transform_3, window_bounds = array<i64: 4, 2>}, {pipeline_mode = #tpu.pipeline_mode<synchronous>, transform_indices = @transform_4, window_bounds = array<i64: 4, 1>}, {pipeline_mode = #tpu.pipeline_mode<synchronous>, transform_indices = @transform_5, window_bounds = array<i64: 4, 1>}, {transform_indices = @transform_6, window_bounds = array<i64: 1>}, {transform_indices = @transform_7, window_bounds = array<i64: 1, 4, 512>}]} {
    %cst = arith.constant 0.000000e+00 : f32
    %0 = vector.broadcast %cst : f32 to vector<4x1xf32>
    %c0 = arith.constant 0 : index
    %c0_0 = arith.constant 0 : index
    %1 = vector.load %arg9[%c0, %c0_0] : memref<4x1xf32, #tpu.memory_space<vmem>>, vector<4x1xf32>
    tpu.vector_store %arg9[%c0, %c0_0], %0 {strides = array<i32>} : memref<4x1xf32, #tpu.memory_space<vmem>>, vector<4x1xf32>,
    %c0_i32 = arith.constant 0 : i32
    %c1_i32 = arith.constant 1 : i32
    %2 = arith.muli %c0_i32, %c1_i32 : i32
    %c0_i32_1 = arith.constant 0 : i32
    %3 = arith.addi %c0_i32_1, %2 : i32
    %c512_i32 = arith.constant 512 : i32
    %4 = arith.muli %3, %c512_i32 : i32
    %5 = tpu.assume_multiple %4, 512 : i32
    %c0_2 = arith.constant 0 : index
    %c0_3 = arith.constant 0 : index
    %6 = arith.index_cast %5 : i32 to index
    %7 = vector.load %arg1[%c0_2, %c0_3, %6] : memref<1x4x512xf32, #tpu.memory_space<vmem>>, vector<1x4x512xf32>
    %8 = vector.shape_cast %7 : vector<1x4x512xf32> to vector<4x512xf32>
    %c0_4 = arith.constant 0 : index
    %c0_5 = arith.constant 0 : index
    %9 = vector.load %arg9[%c0_4, %c0_5] : memref<4x1xf32, #tpu.memory_space<vmem>>, vector<4x1xf32>
    %cst_6 = arith.constant dense<0.000000e+00> : vector<4xf32>
    %10 = vector.multi_reduction <add>, %8, %cst_6 [1] : vector<4x512xf32> to vector<4xf32>
    %11 = vector.shape_cast %10 : vector<4xf32> to vector<4x1xf32>
    %12 = arith.addf %9, %11 : vector<4x1xf32>
    %c0_7 = arith.constant 0 : index
    %c0_8 = arith.constant 0 : index
    %13 = vector.load %arg9[%c0_7, %c0_8] : memref<4x1xf32, #tpu.memory_space<vmem>>, vector<4x1xf32>
    tpu.vector_store %arg9[%c0_7, %c0_8], %12 {strides = array<i32>} : memref<4x1xf32, #tpu.memory_space<vmem>>, vector<4x1xf32>,
    %c1_i32_9 = arith.constant 1 : i32
    %c0_10 = arith.constant 0 : index
    %c0_11 = arith.constant 0 : index
    %14 = vector.load %arg9[%c0_10, %c0_11] : memref<4x1xf32, #tpu.memory_space<vmem>>, vector<4x1xf32>
    %cst_12 = arith.constant 0.001953125 : f32
    %15 = vector.broadcast %cst_12 : f32 to vector<4x1xf32>
    %16 = arith.mulf %14, %15 : vector<4x1xf32>
    %c0_13 = arith.constant 0 : index
    %c0_14 = arith.constant 0 : index
    %17 = vector.load %arg2[%c0_13, %c0_14] : memref<2x4xf32, #tpu.memory_space<vmem>>, vector<2x4xf32>
    %cst_15 = arith.constant dense<0.000000e+00> : vector<2x1xf32>
    %18 = tpu.matmul %17, %16, %cst_15 {dimension_numbers = #tpu.dot_dimension_numbers<[1], [0], [0], [1], [0, 0, 1, 1], [], []>} : vector<2x4xf32>, vector<4x1xf32>, vector<2x1xf32> -> vector<2x1xf32>
    %c0_16 = arith.constant 0 : index
    %c0_17 = arith.constant 0 : index
    %19 = vector.load %arg3[%c0_16, %c0_17] : memref<2x1xf32, #tpu.memory_space<vmem>>, vector<2x1xf32>
    %20 = arith.addf %18, %19 : vector<2x1xf32>
    %cst_18 = arith.constant 0.000000e+00 : f32
    %21 = vector.broadcast %cst_18 : f32 to vector<2x1xf32>
    %22 = arith.maximumf %20, %21 : vector<2x1xf32>
    %c0_19 = arith.constant 0 : index
    %c0_20 = arith.constant 0 : index
    %23 = vector.load %arg4[%c0_19, %c0_20] : memref<4x2xf32, #tpu.memory_space<vmem>>, vector<4x2xf32>
    %cst_21 = arith.constant dense<0.000000e+00> : vector<4x1xf32>
    %24 = tpu.matmul %23, %22, %cst_21 {dimension_numbers = #tpu.dot_dimension_numbers<[1], [0], [0], [1], [0, 0, 1, 1], [], []>} : vector<4x2xf32>, vector<2x1xf32>, vector<4x1xf32> -> vector<4x1xf32>
    %c0_22 = arith.constant 0 : index
    %c0_23 = arith.constant 0 : index
    %25 = vector.load %arg5[%c0_22, %c0_23] : memref<4x1xf32, #tpu.memory_space<vmem>>, vector<4x1xf32>
    %26 = arith.addf %24, %25 : vector<4x1xf32>
    %27 = arith.negf %26 : vector<4x1xf32>
    %28 = math.exp %27 : vector<4x1xf32>
    %cst_24 = arith.constant 1.000000e+00 : f32
    %29 = vector.broadcast %cst_24 : f32 to vector<4x1xf32>
    %30 = arith.addf %29, %28 : vector<4x1xf32>
    %31 = arith.divf %29, %30 : vector<4x1xf32>
    %c0_25 = arith.constant 0 : index
    %c0_26 = arith.constant 0 : index
    %32 = vector.load %arg6[%c0_25, %c0_26] : memref<4x1xf32, #tpu.memory_space<vmem>>, vector<4x1xf32>
    %c0_27 = arith.constant 0 : index
    %33 = memref.load %arg7[%c0_27] : memref<1xf32, #tpu.memory_space<smem>>
    %c0_i32_28 = arith.constant 0 : i32
    %c1_i32_29 = arith.constant 1 : i32
    %34 = arith.muli %c0_i32_28, %c1_i32_29 : i32
    %c0_i32_30 = arith.constant 0 : i32
    %35 = arith.addi %c0_i32_30, %34 : i32
    %c512_i32_31 = arith.constant 512 : i32
    %36 = arith.muli %35, %c512_i32_31 : i32
    %37 = tpu.assume_multiple %36, 512 : i32
    %c0_32 = arith.constant 0 : index
    %c0_33 = arith.constant 0 : index
    %38 = arith.index_cast %37 : i32 to index
    %39 = vector.load %arg1[%c0_32, %c0_33, %38] : memref<1x4x512xf32, #tpu.memory_space<vmem>>, vector<1x4x512xf32>
    %40 = vector.shape_cast %39 : vector<1x4x512xf32> to vector<4x512xf32>
    %41 = vector.broadcast %32 : vector<4x1xf32> to vector<4x512xf32>
    %42 = arith.mulf %40, %41 : vector<4x512xf32>
    %cst_34 = arith.constant dense<0.000000e+00> : vector<512xf32>
    %43 = vector.multi_reduction <add>, %42, %cst_34 [0] : vector<4x512xf32> to vector<512xf32>
    %44 = vector.shape_cast %43 : vector<512xf32> to vector<1x512xf32>
    %45 = vector.broadcast %33 : f32 to vector<1x512xf32>
    %46 = arith.addf %44, %45 : vector<1x512xf32>
    %47 = arith.negf %46 : vector<1x512xf32>
    %48 = math.exp %47 : vector<1x512xf32>
    %cst_35 = arith.constant 1.000000e+00 : f32
    %49 = vector.broadcast %cst_35 : f32 to vector<1x512xf32>
    %50 = arith.addf %49, %48 : vector<1x512xf32>
    %51 = arith.divf %49, %50 : vector<1x512xf32>
    %52 = vector.broadcast %31 : vector<4x1xf32> to vector<4x512xf32>
    %53 = arith.mulf %40, %52 : vector<4x512xf32>
    %54 = vector.broadcast %51 : vector<1x512xf32> to vector<4x512xf32>
    %55 = arith.mulf %40, %54 : vector<4x512xf32>
    %56 = arith.maximumf %53, %55 : vector<4x512xf32>
    %c0_36 = arith.constant 0 : index
    %c0_37 = arith.constant 0 : index
    %57 = arith.index_cast %37 : i32 to index
    %58 = vector.load %arg8[%c0_36, %c0_37, %57] : memref<1x4x512xf32, #tpu.memory_space<vmem>>, vector<1x4x512xf32>
    %59 = vector.shape_cast %58 : vector<1x4x512xf32> to vector<4x512xf32>
    %60 = vector.shape_cast %56 : vector<4x512xf32> to vector<1x4x512xf32>
    tpu.vector_store %arg8[%c0_36, %c0_37, %57], %60 {strides = array<i32>} : memref<1x4x512xf32, #tpu.memory_space<vmem>>, vector<1x4x512xf32>,
    %c1_i32_38 = arith.constant 1 : i32
    return
  }
  func.func @transform_0(%arg0: i32) -> (i32, i32, i32) {
    %c0_i32 = arith.constant 0 : i32
    %c0_i32_0 = arith.constant 0 : i32
    %c0_i32_1 = arith.constant 0 : i32
    return %arg0, %c0_i32, %c0_i32_0 : i32, i32, i32
  }
  func.func @transform_1(%arg0: i32) -> (i32, i32) {
    %c0_i32 = arith.constant 0 : i32
    %c0_i32_0 = arith.constant 0 : i32
    %c0_i32_1 = arith.constant 0 : i32
    return %c0_i32, %c0_i32_0 : i32, i32
  }
  func.func @transform_2(%arg0: i32) -> (i32, i32) {
    %c0_i32 = arith.constant 0 : i32
    %c0_i32_0 = arith.constant 0 : i32
    %c0_i32_1 = arith.constant 0 : i32
    return %c0_i32, %c0_i32_0 : i32, i32
  }
  func.func @transform_3(%arg0: i32) -> (i32, i32) {
    %c0_i32 = arith.constant 0 : i32
    %c0_i32_0 = arith.constant 0 : i32
    %c0_i32_1 = arith.constant 0 : i32
    return %c0_i32, %c0_i32_0 : i32, i32
  }
  func.func @transform_4(%arg0: i32) -> (i32, i32) {
    %c0_i32 = arith.constant 0 : i32
    %c0_i32_0 = arith.constant 0 : i32
    %c0_i32_1 = arith.constant 0 : i32
    return %c0_i32, %c0_i32_0 : i32, i32
  }
  func.func @transform_5(%arg0: i32) -> (i32, i32) {
    %c0_i32 = arith.constant 0 : i32
    %c0_i32_0 = arith.constant 0 : i32
    %c0_i32_1 = arith.constant 0 : i32
    return %c0_i32, %c0_i32_0 : i32, i32
  }
  func.func @transform_6(%arg0: i32) -> i32 {
    %c0_i32 = arith.constant 0 : i32
    %c0_i32_0 = arith.constant 0 : i32
    return %c0_i32 : i32
  }
  func.func @transform_7(%arg0: i32) -> (i32, i32, i32) {
    %c0_i32 = arith.constant 0 : i32
    %c0_i32_0 = arith.constant 0 : i32
    %c0_i32_1 = arith.constant 0 : i32
    return %arg0, %c0_i32, %c0_i32_0 : i32, i32, i32
  }
}

</mosaic_0001>

<llo_original>
// kernel: tpu_custom_call.1
$region0: #{tpu_custom_call.1}
  #allocation0 [shape = 'u32[]', space=smem, size = 0x4, offset = 0x4, fixed_abs, tag = 'smem constant byte address 0x4 - core index']
  #allocation1 [shape = 'u32[72,128]{1,0:T(1,128)}', space=vmem, size = 0x9000, scoped, tag = 'internal scratch']
  #allocation2 [shape = 'f32[4,1]{1,0:T(4,128)}', space=vmem, size = 0x800, scoped, tag = 'scratch operand']
  #allocation3 [shape = 'f32[1]{0:T(128)S(6)}', space=smem, size = 0x200, scoped, tag = 'scoped memory for tpu_custom_call.1']
  %s0 = inlined_call_operand.hbm [shape: f32[2,4,512], index: 0, kind: input, shape index: {}]
  %s1 = inlined_call_operand.vmem [shape: f32[2,4], index: 1, kind: input, shape index: {}]
  %s2 = inlined_call_operand.vmem [shape: f32[2,1], index: 2, kind: input, shape index: {}]
  %s3 = inlined_call_operand.vmem [shape: f32[4,2], index: 3, kind: input, shape index: {}]
  %s4 = inlined_call_operand.vmem [shape: f32[4,1], index: 4, kind: input, shape index: {}]
  %s5 = inlined_call_operand.vmem [shape: f32[4,1], index: 5, kind: input, shape index: {}]
  %s6 = inlined_call_operand.<no memory space> [shape: f32[1], index: 6, kind: input, shape index: {}]
  %s7 = inlined_call_operand.hbm [shape: f32[2,4,512], index: 7, kind: output, shape index: {}]
  %s8 = sld [smem:[#allocation0]]
  $region65: #{tpu_custom_call.1} parent=0
    _
  %s10 = ssub.s32 1, %s8
  %s11 = scalar_select 0, %s10, %s8
  %12 = sst [smem:[#allocation3]] %s6
  $region1: #{tpu_custom_call.1} parent=0
    #allocation4 [shape = 'u8[16384]{0}', space=vmem, size = 0x4000, scoped, tag = 'input window, operand 0']
    #allocation5 [shape = 's32[2]{0}', space=sflag, size = 0x8, scoped, tag = 'scoped memory for tpu_custom_call.1']
    #allocation6 [shape = 's32[2]{0}', space=sflag, size = 0x8, scoped, tag = 'scoped memory for tpu_custom_call.1']
    #allocation7 [shape = 'u8[16384]{0}', space=vmem, size = 0x4000, scoped, tag = 'output window, operand 0']
    %13 = vsyncpa [#allocation5], 0
    %s14 = scalar_lea.sflag [#allocation5], 1
    %15 = vsyncpa %s14, 0
    %16 = vsyncpa [#allocation6], 0
    %s17 = scalar_lea.sflag [#allocation6], 1
    %18 = vsyncpa %s17, 0
    loop: start=0, step=1, limit=4
    $region2: #{tpu_custom_call.1} parent=1 // loop_pre_header
      _
    $region3: #{tpu_custom_call.1} parent=1 // loop_header
      %s20 = sphi 0, %s24
      %p21 = scmp.ge.s32.totalorder %s20, 4
      %s30 = sphi 0, %s32
      %s33 = sphi 0, %s30
      %s34 = sphi 0, %s33
      %s50 = sphi 0, %s34
      %s54 = sphi 0, %s54
      %s56 = sphi 0, %s54
      %s57 = sphi 0, %s56
      %s71 = sphi 0, %s57
      %s75 = sphi 0, %s75
      %s77 = sphi 0, %s75
      %s78 = sphi 0, %s77
      %s92 = sphi 0, %s78
      %s96 = sphi 0, %s96
      %s98 = sphi 0, %s96
      %s99 = sphi 0, %s98
      %s113 = sphi 0, %s99
      %s117 = sphi 0, %s117
      %s119 = sphi 0, %s117
      %s120 = sphi 0, %s119
      %s134 = sphi 0, %s120
      %s138 = sphi 0, %s138
      %s140 = sphi 0, %s138
      %s141 = sphi 0, %s140
      %s155 = sphi 0, %s141
      %s159 = sphi 0, %s159
      %s161 = sphi 0, %s159
      %s162 = sphi 0, %s161
      %s176 = sphi 0, %s162
      %s182 = sphi 0, %s184
      %s185 = sphi 0, %s182
      %s186 = sphi 0, %s185
      %s202 = sphi 0, %s186
    $region4: #{tpu_custom_call.1} parent=1 // loop_header_branch
      %23 = sbr.rel (%p21) target = $region8
    $region5: #{tpu_custom_call.1} parent=1 // loop_body
      %s25 = ssub.s32 %s20, 1
      %s26 = ssub.s32 %s20, 2
      %s27 = sadd.s32 %s20, 1
      %s28 = ssub.s32 %s20, %s27
      %p29 = scmp.eq.s32.totalorder %s28, 0
      %s31 = sadd.s32 %s30, 1
      %s32 = scalar_select %p29, %s30, %s31
      %p35 = pneg %p29
      %p36 = scmp.eq.s32.totalorder %s20, 1
      %p37 = por %p35, %p36
      %p38 = scmp.ne.s32.totalorder %s30, %s33
      %p39 = scmp.eq.s32.totalorder %s20, 0
      %p40 = por %p38, %p39
      %p41 = scmp.ne.s32.totalorder %s30, %s33
      %p42 = scmp.eq.s32.totalorder %s25, 1
      %p43 = por %p41, %p42
      %p44 = scmp.ne.s32.totalorder %s33, %s34
      %p45 = scmp.eq.s32.totalorder %s25, 0
      %p46 = por %p44, %p45
      %p47 = scmp.ne.s32.totalorder %s33, %s34
      %p48 = scmp.eq.s32.totalorder %s26, 1
      %p49 = por %p47, %p48
      %p51 = scmp.ne.s32.totalorder %s34, %s50
      %p52 = scmp.eq.s32.totalorder %s26, 0
      %p53 = por %p51, %p52
      %s55 = sadd.s32 %s54, 1
      %p58 = scmp.eq.s32.totalorder %s20, 1
      %p59 = scmp.ne.s32.totalorder %s54, %s56
      %p60 = scmp.eq.s32.totalorder %s20, 0
      %p61 = por %p59, %p60
      %p62 = scmp.ne.s32.totalorder %s54, %s56
      %p63 = scmp.eq.s32.totalorder %s25, 1
      %p64 = por %p62, %p63
      %p65 = scmp.ne.s32.totalorder %s56, %s57
      %p66 = scmp.eq.s32.totalorder %s25, 0
      %p67 = por %p65, %p66
      %p68 = scmp.ne.s32.totalorder %s56, %s57
      %p69 = scmp.eq.s32.totalorder %s26, 1
      %p70 = por %p68, %p69
      %p72 = scmp.ne.s32.totalorder %s57, %s71
      %p73 = scmp.eq.s32.totalorder %s26, 0
      %p74 = por %p72, %p73
      %s76 = sadd.s32 %s75, 1
      %p79 = scmp.eq.s32.totalorder %s20, 1
      %p80 = scmp.ne.s32.totalorder %s75, %s77
      %p81 = scmp.eq.s32.totalorder %s20, 0
      %p82 = por %p80, %p81
      %p83 = scmp.ne.s32.totalorder %s75, %s77
      %p84 = scmp.eq.s32.totalorder %s25, 1
      %p85 = por %p83, %p84
      %p86 = scmp.ne.s32.totalorder %s77, %s78
      %p87 = scmp.eq.s32.totalorder %s25, 0
      %p88 = por %p86, %p87
      %p89 = scmp.ne.s32.totalorder %s77, %s78
      %p90 = scmp.eq.s32.totalorder %s26, 1
      %p91 = por %p89, %p90
      %p93 = scmp.ne.s32.totalorder %s78, %s92
      %p94 = scmp.eq.s32.totalorder %s26, 0
      %p95 = por %p93, %p94
      %s97 = sadd.s32 %s96, 1
      %p100 = scmp.eq.s32.totalorder %s20, 1
      %p101 = scmp.ne.s32.totalorder %s96, %s98
      %p102 = scmp.eq.s32.totalorder %s20, 0
      %p103 = por %p101, %p102
      %p104 = scmp.ne.s32.totalorder %s96, %s98
      %p105 = scmp.eq.s32.totalorder %s25, 1
      %p106 = por %p104, %p105
      %p107 = scmp.ne.s32.totalorder %s98, %s99
      %p108 = scmp.eq.s32.totalorder %s25, 0
      %p109 = por %p107, %p108
      %p110 = scmp.ne.s32.totalorder %s98, %s99
      %p111 = scmp.eq.s32.totalorder %s26, 1
      %p112 = por %p110, %p111
      %p114 = scmp.ne.s32.totalorder %s99, %s113
      %p115 = scmp.eq.s32.totalorder %s26, 0
      %p116 = por %p114, %p115
      %s118 = sadd.s32 %s117, 1
      %p121 = scmp.eq.s32.totalorder %s20, 1
      %p122 = scmp.ne.s32.totalorder %s117, %s119
      %p123 = scmp.eq.s32.totalorder %s20, 0
      %p124 = por %p122, %p123
      %p125 = scmp.ne.s32.totalorder %s117, %s119
      %p126 = scmp.eq.s32.totalorder %s25, 1
      %p127 = por %p125, %p126
      %p128 = scmp.ne.s32.totalorder %s119, %s120
      %p129 = scmp.eq.s32.totalorder %s25, 0
      %p130 = por %p128, %p129
      %p131 = scmp.ne.s32.totalorder %s119, %s120
      %p132 = scmp.eq.s32.totalorder %s26, 1
      %p133 = por %p131, %p132
      %p135 = scmp.ne.s32.totalorder %s120, %s134
      %p136 = scmp.eq.s32.totalorder %s26, 0
      %p137 = por %p135, %p136
      %s139 = sadd.s32 %s138, 1
      %p142 = scmp.eq.s32.totalorder %s20, 1
      %p143 = scmp.ne.s32.totalorder %s138, %s140
      %p144 = scmp.eq.s32.totalorder %s20, 0
      %p145 = por %p143, %p144
      %p146 = scmp.ne.s32.totalorder %s138, %s140
      %p147 = scmp.eq.s32.totalorder %s25, 1
      %p148 = por %p146, %p147
      %p149 = scmp.ne.s32.totalorder %s140, %s141
      %p150 = scmp.eq.s32.totalorder %s25, 0
      %p151 = por %p149, %p150
      %p152 = scmp.ne.s32.totalorder %s140, %s141
      %p153 = scmp.eq.s32.totalorder %s26, 1
      %p154 = por %p152, %p153
      %p156 = scmp.ne.s32.totalorder %s141, %s155
      %p157 = scmp.eq.s32.totalorder %s26, 0
      %p158 = por %p156, %p157
      %s160 = sadd.s32 %s159, 1
      %p163 = scmp.eq.s32.totalorder %s20, 1
      %p164 = scmp.ne.s32.totalorder %s159, %s161
      %p165 = scmp.eq.s32.totalorder %s20, 0
      %p166 = por %p164, %p165
      %p167 = scmp.ne.s32.totalorder %s159, %s161
      %p168 = scmp.eq.s32.totalorder %s25, 1
      %p169 = por %p167, %p168
      %p170 = scmp.ne.s32.totalorder %s161, %s162
      %p171 = scmp.eq.s32.totalorder %s25, 0
      %p172 = por %p170, %p171
      %p173 = scmp.ne.s32.totalorder %s161, %s162
      %p174 = scmp.eq.s32.totalorder %s26, 1
      %p175 = por %p173, %p174
      %p177 = scmp.ne.s32.totalorder %s162, %s176
      %p178 = scmp.eq.s32.totalorder %s26, 0
      %p179 = por %p177, %p178
      %s180 = ssub.s32 %s20, %s27
      %p181 = scmp.eq.s32.totalorder %s180, 0
      %s183 = sadd.s32 %s182, 1
      %s184 = scalar_select %p181, %s182, %s183
      %p187 = pneg %p181
      %p188 = scmp.eq.s32.totalorder %s20, 1
      %p189 = por %p187, %p188
      %p190 = scmp.ne.s32.totalorder %s182, %s185
      %p191 = scmp.eq.s32.totalorder %s20, 0
      %p192 = por %p190, %p191
      %p193 = scmp.ne.s32.totalorder %s182, %s185
      %p194 = scmp.eq.s32.totalorder %s25, 1
      %p195 = por %p193, %p194
      %p196 = scmp.ne.s32.totalorder %s185, %s186
      %p197 = scmp.eq.s32.totalorder %s25, 0
      %p198 = por %p196, %p197
      %p199 = scmp.ne.s32.totalorder %s185, %s186
      %p200 = scmp.eq.s32.totalorder %s26, 1
      %p201 = por %p199, %p200
      %p203 = scmp.ne.s32.totalorder %s186, %s202
      %p204 = scmp.eq.s32.totalorder %s26, 0
      %p205 = por %p203, %p204
      %p206 = scmp.le.s32.totalorder 1, %s20
      %p207 = scmp.lt.s32.totalorder %s20, 3
      %p208 = pnand %p206, %p207
      %p209 = pneg %p208
      // Predicated region
      $region9: #{tpu_custom_call.1} parent=5 // pred_check
        _
      $region10: #{tpu_custom_call.1} parent=5 // pred_check_branch
        %211 = sbr.rel (%p208) target = $region12
      $region11: #{tpu_custom_call.1} parent=5 // pred_region
        %s212 = ssub.s32 %s20, 1
        // Predicated region
        $region13: #{tpu_custom_call.1} parent=11 // pred_check
          %p213 = pneg %p67
        $region14: #{tpu_custom_call.1} parent=11 // pred_check_branch
          %215 = sbr.rel (%p213) target = $region16
        $region15: #{tpu_custom_call.1} parent=11 // pred_region
          _
        $region16: #{tpu_custom_call.1} parent=11 // pred_fallthru
          _
        // Predicated region
        $region17: #{tpu_custom_call.1} parent=11 // pred_check
          %p216 = pneg %p88
        $region18: #{tpu_custom_call.1} parent=11 // pred_check_branch
          %218 = sbr.rel (%p216) target = $region20
        $region19: #{tpu_custom_call.1} parent=11 // pred_region
          _
        $region20: #{tpu_custom_call.1} parent=11 // pred_fallthru
          _
        // Predicated region
        $region21: #{tpu_custom_call.1} parent=11 // pred_check
          %p219 = pneg %p109
        $region22: #{tpu_custom_call.1} parent=11 // pred_check_branch
          %221 = sbr.rel (%p219) target = $region24
        $region23: #{tpu_custom_call.1} parent=11 // pred_region
          _
        $region24: #{tpu_custom_call.1} parent=11 // pred_fallthru
          _
        // Predicated region
        $region25: #{tpu_custom_call.1} parent=11 // pred_check
          %p222 = pneg %p130
        $region26: #{tpu_custom_call.1} parent=11 // pred_check_branch
          %224 = sbr.rel (%p222) target = $region28
        $region27: #{tpu_custom_call.1} parent=11 // pred_region
          _
        $region28: #{tpu_custom_call.1} parent=11 // pred_fallthru
          _
        // Predicated region
        $region29: #{tpu_custom_call.1} parent=11 // pred_check
          %p225 = pneg %p151
        $region30: #{tpu_custom_call.1} parent=11 // pred_check_branch
          %227 = sbr.rel (%p225) target = $region32
        $region31: #{tpu_custom_call.1} parent=11 // pred_region
          _
        $region32: #{tpu_custom_call.1} parent=11 // pred_fallthru
          _
        // Predicated region
        $region33: #{tpu_custom_call.1} parent=11 // pred_check
          %p228 = pneg %p172
        $region34: #{tpu_custom_call.1} parent=11 // pred_check_branch
          %230 = sbr.rel (%p228) target = $region36
        $region35: #{tpu_custom_call.1} parent=11 // pred_region
          _
        $region36: #{tpu_custom_call.1} parent=11 // pred_fallthru
          _
      $region12: #{tpu_custom_call.1} parent=5 // pred_fallthru
        _
      %p231 = scmp.lt.s32.totalorder %s20, 2
      // Predicated region
      $region37: #{tpu_custom_call.1} parent=5 // pred_check
        %p232 = pneg %p231
      $region38: #{tpu_custom_call.1} parent=5 // pred_check_branch
        %234 = sbr.rel (%p232) target = $region40
      $region39: #{tpu_custom_call.1} parent=5 // pred_region
        // Predicated region
        $region41: #{tpu_custom_call.1} parent=39 // pred_check
          %p235 = pneg %p40
        $region42: #{tpu_custom_call.1} parent=39 // pred_check_branch
          %237 = sbr.rel (%p235) target = $region44
        $region43: #{tpu_custom_call.1} parent=39 // pred_region
          %s238 = sand.u32 %s30, 1
          %s239 = scalar_lea.sflag [#allocation5], %s238
          %s240 = sand.u32 %s30, 1
          %s241 = smul.addr %s240, 16
          %s242 = scalar_lea.vmem [#allocation4], %s241
          %244 = vsyncadd %s239, 0
          %s245 = smul.addr %s20, 4
          %s246 = smul.addr %s245, 4
          %s247 = scalar_lea.hbm %s0, %s246
          %s249 = sshll.u32 %s247, 4
          %s250 = int_to_ptr.hbm [resolvable:$true] %s249
          %s251 = sshll.u32 %s242, 4
          %s252 = int_to_ptr.vmem [resolvable:$true] %s251
          %254 = dma.hbm_to_vmem [thread:$0]  %s250, 256, %s252, %s239
        $region44: #{tpu_custom_call.1} parent=39 // pred_fallthru
          _
      $region40: #{tpu_custom_call.1} parent=5 // pred_fallthru
        _
      %p255 = scmp.le.s32.totalorder 1, %s20
      %p256 = scmp.lt.s32.totalorder %s20, 3
      %p257 = pnand %p255, %p256
      %p258 = pneg %p257
      // Predicated region
      $region45: #{tpu_custom_call.1} parent=5 // pred_check
        _
      $region46: #{tpu_custom_call.1} parent=5 // pred_check_branch
        %260 = sbr.rel (%p257) target = $region48
      $region47: #{tpu_custom_call.1} parent=5 // pred_region
        %s261 = ssub.s32 %s20, 1
        %s262 = sand.u32 %s33, 1
        %s263 = scalar_lea.sflag [#allocation5], %s262
        %s264 = sand.u32 %s33, 1
        %s265 = smul.addr %s264, 16
        %s266 = scalar_lea.vmem [#allocation4], %s265
        // Predicated region
        $region49: #{tpu_custom_call.1} parent=47 // pred_check
          %p267 = pneg %p46
        $region50: #{tpu_custom_call.1} parent=47 // pred_check_branch
          %269 = sbr.rel (%p267) target = $region52
        $region51: #{tpu_custom_call.1} parent=47 // pred_region
          %271 = dma.done %s263, 256
        $region52: #{tpu_custom_call.1} parent=47 // pred_fallthru
          _
        %s272 = sand.u32 %s33, 1
        %s273 = scalar_lea.sflag [#allocation5], %s272
        %s274 = sand.u32 %s33, 1
        %s275 = smul.addr %s274, 16
        %s276 = scalar_lea.vmem [#allocation4], %s275
        %p277 = pneg %p46
        %p278 = pneg %p43
        %p279 = pneg %p67
        %p280 = pneg %p64
        %p281 = pneg %p88
        %p282 = pneg %p85
        %p283 = pneg %p109
        %p284 = pneg %p106
        %p285 = pneg %p130
        %p286 = pneg %p127
        %p287 = pneg %p151
        %p288 = pneg %p148
        %p289 = pneg %p172
        %p290 = pneg %p169
        %p291 = pneg %p198
        %p292 = pneg %p195
        %s293 = sand.u32 %s185, 1
        %s294 = scalar_lea.sflag [#allocation6], %s293
        %s295 = sand.u32 %s185, 1
        %s296 = smul.addr %s295, 16
        %s297 = scalar_lea.vmem [#allocation7], %s296
        %vm298 = vcmask 3072
        %299 = vst.msk [vmem:[#allocation2] sm:$0xf] %vm298, 0.0
        %v300 = vld [vmem:[%s266] sm:$0xff]
        %v301 = vld [vmem:[%s266 + $0x8] sm:$0xff]
        %v302 = vld [vmem:[#allocation2] sm:$0xf]
        %305 = vst [vmem:[#allocation1] ss:$2 sm:$0xff] %v300
        %s306 = scalar_lea.vmem [#allocation1], 16
        %307 = vst [vmem:[%s306] ss:$2 sm:$0xff] %v301
        %v308 = vld.sshfl [vmem:[#allocation1] sm:$0xff pattern:$0x75316420]
        %v309 = vld.sshfl [vmem:[#allocation1 + $0x8] sm:$0xff pattern:$0x75316420]
        %v310 = vld.sshfl [vmem:[#allocation1 + $0x10] sm:$0xff pattern:$0x75316420]
        %v311 = vld.sshfl [vmem:[#allocation1 + $0x18] sm:$0xff pattern:$0x75316420]
        %vm316 = vcmask 1043456
        %v317 = vsel %vm316, %v308, 0.0
        %v318 = vsel %vm316, %v309, 0.0
        %v319 = vadd.f32 %v317, %v318
        %v320 = vsel %vm316, %v310, 0.0
        %v321 = vadd.f32 %v319, %v320
        %v322 = vsel %vm316, %v311, 0.0
        %v323 = vadd.f32 %v321, %v322
        %324 = vadd.xlane.f32.xlu0 %v323
        %v325 = vpop.xlane.xlu0 %324
        %v326 = vadd.f32 %v302, %v325
        %327 = vst.msk [vmem:[#allocation2] sm:$0xf] %vm298, %v326
        %v328 = vld [vmem:[#allocation2] sm:$0xf]
        %v329 = vmul.f32 %v328, 0.001953125
        %v330 = vld [vmem:[%s1] sm:$0x3]
        %v331 = vld [vmem:[%s2] sm:$0x3]
        %vm332 = vcmask 31744
        %v334 = vsel %vm332, %v330, 0
        %v337 = vsel %vm316, %v329, 0
        %339 = vmatpush.msra.mxu0 0.0
        %340 = vmatpush.msra.mxu0 0.0
        %341 = vmatpush.msra.mxu0 0.0
        %342 = vmatpush.msra.mxu0 0.0
        %343 = vmatpush.msra.mxu0 0.0
        %344 = vmatpush.msra.mxu0 0.0
        %345 = vmatpush.msra.mxu0 0.0
        %346 = vmatpush.msra.mxu0 0.0
        %347 = vmatpush.msra.mxu0 0.0
        %348 = vmatpush.msra.mxu0 0.0
        %349 = vmatpush.msra.mxu0 0.0
        %350 = vmatpush.msra.mxu0 0.0
        %351 = vmatpush.msra.mxu0 0.0
        %352 = vmatpush.msra.mxu0 0.0
        %353 = vmatpush.msra.mxu0 0.0
        %354 = vmatpush.msra.mxu0 %v337
        %355 = vmatmul.f32.gmra.mxu0 %v334
        %v356 = vpop.f32.mrf.mxu0
        %v357 = vadd.f32 %v331, %v356
        %358 = vdwg.mxu0
        %v359 = vmax.f32 %v357, 0.0
        %v360 = vld [vmem:[%s3] sm:$0xf]
        %v361 = vld [vmem:[%s4] sm:$0xf]
        %vm362 = vcmask 15360
        %v364 = vsel %vm362, %v360, 0
        %vm366 = vcmask 1041408
        %v368 = vsel %vm366, %v359, 0
        %370 = vmatpush.msra.mxu0 0.0
        %371 = vmatpush.msra.mxu0 0.0
        %372 = vmatpush.msra.mxu0 0.0
        %373 = vmatpush.msra.mxu0 0.0
        %374 = vmatpush.msra.mxu0 0.0
        %375 = vmatpush.msra.mxu0 0.0
        %376 = vmatpush.msra.mxu0 0.0
        %377 = vmatpush.msra.mxu0 0.0
        %378 = vmatpush.msra.mxu0 0.0
        %379 = vmatpush.msra.mxu0 0.0
        %380 = vmatpush.msra.mxu0 0.0
        %381 = vmatpush.msra.mxu0 0.0
        %382 = vmatpush.msra.mxu0 0.0
        %383 = vmatpush.msra.mxu0 0.0
        %384 = vmatpush.msra.mxu0 0.0
        %385 = vmatpush.msra.mxu0 %v368
        %386 = vmatmul.f32.gmra.mxu0 %v364
        %v387 = vpop.f32.mrf.mxu0
        %v388 = vadd.f32 %v361, %v387
        %389 = vdwg.mxu0
        %v390 = vxor.u32 %v388, 2147483648
        %v391 = vmul.f32 %v390, 1.442695
        %v392 = vpow.pop %v391
        %v393 = vadd.f32 %v392, 1.0
        %v394 = vrcp.pop %v393
        %v395 = vmul.f32 %v393, %v394
        %v396 = vsub.f32 1.0, %v395
        %v397 = vmul.f32 %v394, %v396
        %v398 = vadd.f32 %v394, %v397
        %vm399 = vweird.f32 %v393
        %vm400 = vweird.f32 %v394
        %vm401 = vmor %vm399, %vm400
        %v402 = vsel %vm401, %v394, %v398
        %v403 = vand.u32 2147483647, %v393
        %vm404 = vcmp.eq.f32.partialorder %v403, 8.507059e+37
        %v405 = vand.u32 %v393, 2147483648
        %v406 = vor.u32 1.1754944e-38, %v405
        %v407 = vsel %vm404, %v406, %v402
        %v408 = vmul.f32 1.0, %v407
        %v409 = vld [vmem:[%s5] sm:$0xf]
        %s410 = sld [smem:[#allocation3]]
        %v411 = vld [vmem:[%s266] sm:$0xff]
        %v412 = vld [vmem:[%s266 + $0x8] sm:$0xff]
        %414 = vset.pattern.permute.xlu0 0
        %415 = vperm.xlu0 %414, %v409
        %v416 = vpop.permute.xlu0 %415
        %v418 = vunpack.c.l.s4 839922192
        %v419 = vunpack.c.0.s8 %v418
        %v420 = vperm.slane %v416, %v419
        %v422 = vmul.f32 %v411, %v420
        %v423 = vmul.f32 %v412, %v420
        %426 = vst [vmem:[#allocation1] ss:$2 sm:$0xff] %v422
        %s427 = scalar_lea.vmem [#allocation1], 16
        %428 = vst [vmem:[%s427] ss:$2 sm:$0xff] %v423
        %v429 = vld.sshfl [vmem:[#allocation1] sm:$0xff pattern:$0x75316420]
        %v430 = vld.sshfl [vmem:[#allocation1 + $0x8] sm:$0xff pattern:$0x75316420]
        %v431 = vld.sshfl [vmem:[#allocation1 + $0x10] sm:$0xff pattern:$0x75316420]
        %v432 = vld.sshfl [vmem:[#allocation1 + $0x18] sm:$0xff pattern:$0x75316420]
        %v437 = vsel %vm316, %v429, 0.0
        %v438 = vrot.slane %v437, 4
        %v439 = vadd.f32 %v437, %v438
        %v440 = vrot.slane %v439, 2
        %v441 = vadd.f32 %v439, %v440
        %v442 = vrot.slane %v441, 1
        %v443 = vadd.f32 %v441, %v442
        %v444 = vsel %vm316, %v430, 0.0
        %v445 = vrot.slane %v444, 4
        %v446 = vadd.f32 %v444, %v445
        %v447 = vrot.slane %v446, 2
        %v448 = vadd.f32 %v446, %v447
        %v449 = vrot.slane %v448, 1
        %v450 = vadd.f32 %v448, %v449
        %v451 = vsel %vm316, %v431, 0.0
        %v452 = vrot.slane %v451, 4
        %v453 = vadd.f32 %v451, %v452
        %v454 = vrot.slane %v453, 2
        %v455 = vadd.f32 %v453, %v454
        %v456 = vrot.slane %v455, 1
        %v457 = vadd.f32 %v455, %v456
        %v458 = vsel %vm316, %v432, 0.0
        %v459 = vrot.slane %v458, 4
        %v460 = vadd.f32 %v458, %v459
        %v461 = vrot.slane %v460, 2
        %v462 = vadd.f32 %v460, %v461
        %v463 = vrot.slane %v462, 1
        %v464 = vadd.f32 %v462, %v463
        %v465 = vstv %s410
        %v466 = vadd.f32 %v443, %v465
        %v467 = vadd.f32 %v450, %v465
        %v468 = vadd.f32 %v457, %v465
        %v469 = vadd.f32 %v464, %v465
        %v470 = vxor.u32 %v466, 2147483648
        %v471 = vxor.u32 %v467, 2147483648
        %v472 = vxor.u32 %v468, 2147483648
        %v473 = vxor.u32 %v469, 2147483648
        %v474 = vmul.f32 %v470, 1.442695
        %v475 = vpow.pop %v474
        %v476 = vmul.f32 %v471, 1.442695
        %v477 = vpow.pop %v476
        %v478 = vmul.f32 %v472, 1.442695
        %v479 = vpow.pop %v478
        %v480 = vmul.f32 %v473, 1.442695
        %v481 = vpow.pop %v480
        %v482 = vadd.f32 %v475, 1.0
        %v483 = vadd.f32 %v477, 1.0
        %v484 = vadd.f32 %v479, 1.0
        %v485 = vadd.f32 %v481, 1.0
        %v486 = vrcp.pop %v482
        %v487 = vmul.f32 %v482, %v486
        %v488 = vsub.f32 1.0, %v487
        %v489 = vmul.f32 %v486, %v488
        %v490 = vadd.f32 %v486, %v489
        %vm491 = vweird.f32 %v482
        %vm492 = vweird.f32 %v486
        %vm493 = vmor %vm491, %vm492
        %v494 = vsel %vm493, %v486, %v490
        %v495 = vand.u32 2147483647, %v482
        %vm496 = vcmp.eq.f32.partialorder %v495, 8.507059e+37
        %v497 = vand.u32 %v482, 2147483648
        %v498 = vor.u32 1.1754944e-38, %v497
        %v499 = vsel %vm496, %v498, %v494
        %v500 = vmul.f32 1.0, %v499
        %v501 = vrcp.pop %v483
        %v502 = vmul.f32 %v483, %v501
        %v503 = vsub.f32 1.0, %v502
        %v504 = vmul.f32 %v501, %v503
        %v505 = vadd.f32 %v501, %v504
        %vm506 = vweird.f32 %v483
        %vm507 = vweird.f32 %v501
        %vm508 = vmor %vm506, %vm507
        %v509 = vsel %vm508, %v501, %v505
        %v510 = vand.u32 2147483647, %v483
        %vm511 = vcmp.eq.f32.partialorder %v510, 8.507059e+37
        %v512 = vand.u32 %v483, 2147483648
        %v513 = vor.u32 1.1754944e-38, %v512
        %v514 = vsel %vm511, %v513, %v509
        %v515 = vmul.f32 1.0, %v514
        %v516 = vrcp.pop %v484
        %v517 = vmul.f32 %v484, %v516
        %v518 = vsub.f32 1.0, %v517
        %v519 = vmul.f32 %v516, %v518
        %v520 = vadd.f32 %v516, %v519
        %vm521 = vweird.f32 %v484
        %vm522 = vweird.f32 %v516
        %vm523 = vmor %vm521, %vm522
        %v524 = vsel %vm523, %v516, %v520
        %v525 = vand.u32 2147483647, %v484
        %vm526 = vcmp.eq.f32.partialorder %v525, 8.507059e+37
        %v527 = vand.u32 %v484, 2147483648
        %v528 = vor.u32 1.1754944e-38, %v527
        %v529 = vsel %vm526, %v528, %v524
        %v530 = vmul.f32 1.0, %v529
        %v531 = vrcp.pop %v485
        %v532 = vmul.f32 %v485, %v531
        %v533 = vsub.f32 1.0, %v532
        %v534 = vmul.f32 %v531, %v533
        %v535 = vadd.f32 %v531, %v534
        %vm536 = vweird.f32 %v485
        %vm537 = vweird.f32 %v531
        %vm538 = vmor %vm536, %vm537
        %v539 = vsel %vm538, %v531, %v535
        %v540 = vand.u32 2147483647, %v485
        %vm541 = vcmp.eq.f32.partialorder %v540, 8.507059e+37
        %v542 = vand.u32 %v485, 2147483648
        %v543 = vor.u32 1.1754944e-38, %v542
        %v544 = vsel %vm541, %v543, %v539
        %v545 = vmul.f32 1.0, %v544
        %547 = vset.pattern.permute.xlu0 0
        %548 = vperm.xlu0 %547, %v408
        %v549 = vpop.permute.xlu0 %548
        %v551 = vunpack.c.l.s4 839922192
        %v552 = vunpack.c.0.s8 %v551
        %v553 = vperm.slane %v549, %v552
        %v555 = vmul.f32 %v411, %v553
        %v556 = vmul.f32 %v412, %v553
        %v561 = vrot.slane %v515, 4
        %v562 = vrot.slane %v545, 4
        %v563 = vsel %vm316, %v500, %v561
        %v564 = vsel %vm316, %v530, %v562
        %v567 = vmul.f32 %v411, %v563
        %v568 = vmul.f32 %v412, %v564
        %v569 = vmax.f32 %v555, %v567
        %v570 = vmax.f32 %v556, %v568
        %571 = vst [vmem:[%s297] sm:$0xff] %v569
        %572 = vst [vmem:[%s297 + $0x8] sm:$0xff] %v570
        %s573 = sand.u32 %s185, 1
        %s574 = scalar_lea.sflag [#allocation6], %s573
        %s575 = sand.u32 %s185, 1
        %s576 = smul.addr %s575, 16
        %s577 = scalar_lea.vmem [#allocation7], %s576
        // Predicated region
        $region53: #{tpu_custom_call.1} parent=47 // pred_check
          %p578 = pneg %p195
        $region54: #{tpu_custom_call.1} parent=47 // pred_check_branch
          %580 = sbr.rel (%p578) target = $region56
        $region55: #{tpu_custom_call.1} parent=47 // pred_region
          %582 = vsyncadd %s574, 0
          %s583 = smul.addr %s25, 4
          %s584 = smul.addr %s583, 4
          %s585 = scalar_lea.hbm %s7, %s584
          %s587 = sshll.u32 %s577, 4
          %s588 = int_to_ptr.vmem [resolvable:$true] %s587
          %s589 = sshll.u32 %s585, 4
          %s590 = int_to_ptr.hbm [resolvable:$true] %s589
          %592 = dma.vmem_to_hbm [thread:$0]  %s588, 256, %s590, %s574
        $region56: #{tpu_custom_call.1} parent=47 // pred_fallthru
          _
      $region48: #{tpu_custom_call.1} parent=5 // pred_fallthru
        _
      %p593 = scmp.le.s32.totalorder 2, %s20
      // Predicated region
      $region57: #{tpu_custom_call.1} parent=5 // pred_check
        %p594 = pneg %p593
      $region58: #{tpu_custom_call.1} parent=5 // pred_check_branch
        %596 = sbr.rel (%p594) target = $region60
      $region59: #{tpu_custom_call.1} parent=5 // pred_region
        %s597 = ssub.s32 %s20, 2
        // Predicated region
        $region61: #{tpu_custom_call.1} parent=59 // pred_check
          %p598 = pneg %p201
        $region62: #{tpu_custom_call.1} parent=59 // pred_check_branch
          %600 = sbr.rel (%p598) target = $region64
        $region63: #{tpu_custom_call.1} parent=59 // pred_region
          %s601 = sand.u32 %s186, 1
          %s602 = scalar_lea.sflag [#allocation6], %s601
          %s603 = sand.u32 %s186, 1
          %s604 = smul.addr %s603, 16
          %s605 = scalar_lea.vmem [#allocation7], %s604
          %607 = dma.done %s602, 256
        $region64: #{tpu_custom_call.1} parent=59 // pred_fallthru
          _
      $region60: #{tpu_custom_call.1} parent=5 // pred_fallthru
        _
    $region6: #{tpu_custom_call.1} parent=1 // loop_footer
      %s24 = sadd.s32 1, %s20
    $region7: #{tpu_custom_call.1} parent=1 // loop_footer_branch
      %19 = sbr.rel target = $region3
    $region8: #{tpu_custom_call.1} parent=1 // loop_exit
      _
    %608 = vsyncpa [#allocation5], 1
    %s609 = scalar_lea.sflag [#allocation5], 1
    %610 = vsyncpa %s609, 1
    %611 = vsyncpa [#allocation6], 1
    %s612 = scalar_lea.sflag [#allocation6], 1
    %613 = vsyncpa %s612, 1

</llo_original>
